<compile_context>
chip_gen: v5e
topology: v5e:2x2
jax: 0.10.0
libtpu: 0.0.40
codegen_flags: <defaults>
</compile_context>

<pallas_src>
import jax
import jax.numpy as jnp
from jax import lax
from jax.experimental import pallas as pl
from jax.experimental.pallas import tpu as pltpu


# ---------------------------------------------------------------------------
# Fused Pallas kernel: per-pixel multiply-reduce + bias + sigmoid
# ---------------------------------------------------------------------------
def _clsnet_kernel(x_ref, w_ref, b_ref, o_ref):
    # x_ref: (B, N) f32 VMEM   (x in native NCHW order, flattened)
    # w_ref: (1, N) f32 VMEM   (fully-folded per-input-pixel weights)
    # b_ref: (1,)   f32 SMEM   (fully-folded scalar bias)
    # o_ref: (B, 1) f32 VMEM
    prod = x_ref[...] * w_ref[...]                  # VPU, sublane broadcast of w
    z = jnp.sum(prod, axis=1, keepdims=True)        # (B, 1) cross-lane reduce (XLU)
    o_ref[...] = jax.nn.sigmoid(z + b_ref[0])       # EUP; tiny final store


# ---------------------------------------------------------------------------
# One-time parameter folding (host/XLA side, NOT per-forward).
# The pre-sigmoid network is affine, so its exact per-pixel weights are the
# gradient of the scalar output w.r.t. the input, and its bias is the output
# at x = 0.  Done once; the kernel only ever sees (w_px, b_tot).
# ---------------------------------------------------------------------------
def fold_params(params, in_shape_chw):
    Cin, H, W = in_shape_chw
    hi = lax.Precision.HIGHEST
    dn = ("NHWC", "HWIO", "NHWC")

    def pre_sigmoid(x_chw):                          # x_chw: (Cin, H, W), NCHW order
        x = jnp.transpose(x_chw[None], (0, 2, 3, 1))             # (1, H, W, Cin)
        y1 = lax.conv_general_dilated(x, params["w1"], (2, 2), ((1, 1), (1, 1)),
                                      dimension_numbers=dn, precision=hi) + params["b1"]
        y2 = lax.conv_general_dilated(y1, params["w2"], (2, 2), ((1, 1), (1, 1)),
                                      dimension_numbers=dn, precision=hi) + params["b2"]
        pooled = y2.mean(axis=(1, 2))                            # AdaptiveAvgPool2d(1)
        z = jnp.dot(pooled, params["w3"], precision=hi) + params["b3"]
        return z[0, 0]

    zeros = jnp.zeros((Cin, H, W), jnp.float32)
    b_tot = pre_sigmoid(zeros)                       # affine offset (all biases folded)
    w_px = jax.grad(pre_sigmoid)(zeros)              # exact: map is affine in x
    return {"w": w_px.reshape(1, Cin * H * W).astype(jnp.float32),
            "b": b_tot.reshape(1).astype(jnp.float32)}


def init_params(key, in_channels=3, scale_factor=2):
    c1 = 128 // scale_factor   # 64
    c2 = 32 // scale_factor    # 16
    k = jax.random.split(key, 6)
    # conv weights stored HWIO: (kh, kw, Cin, Cout)
    return {
        "w1": jax.random.normal(k[0], (3, 3, in_channels, c1), jnp.float32) * 0.1,
        "b1": jax.random.normal(k[1], (c1,), jnp.float32) * 0.01,
        "w2": jax.random.normal(k[2], (3, 3, c1, c2), jnp.float32) * 0.05,
        "b2": jax.random.normal(k[3], (c2,), jnp.float32) * 0.01,
        "w3": jax.random.normal(k[4], (c2, 1), jnp.float32) * 0.1,
        "b3": jax.random.normal(k[5], (1,), jnp.float32) * 0.01,
    }


# ---------------------------------------------------------------------------
# ClsNet forward: one fused pallas_call, x consumed directly in NCHW order
# ---------------------------------------------------------------------------
def clsnet_forward(x_nchw, folded):
    B = x_nchw.shape[0]
    N = folded["w"].shape[1]
    x_flat = x_nchw.reshape(B, N)                    # NCHW flatten; matches w_px order

    vmem = pl.BlockSpec(memory_space=pltpu.MemorySpace.VMEM)
    smem = pl.BlockSpec(memory_space=pltpu.MemorySpace.SMEM)
    cost = pl.CostEstimate(
        flops=2 * B * N + 2 * B,
        transcendentals=B,
        bytes_accessed=4 * (B * N + N + 1 + B),
    )
    return pl.pallas_call(
        _clsnet_kernel,
        out_shape=jax.ShapeDtypeStruct((B, 1), jnp.float32),
        in_specs=[vmem, vmem, smem],
        out_specs=vmem,
        cost_estimate=cost,
    )(x_flat, folded["w"], folded["b"])


# Pure-JAX reference (correctness check only), true-f32 precision.
def clsnet_reference(x_nchw, params):
    x = jnp.transpose(x_nchw, (0, 2, 3, 1))
    dn = ("NHWC", "HWIO", "NHWC")
    hi = lax.Precision.HIGHEST
    y1 = lax.conv_general_dilated(x, params["w1"], (2, 2), ((1, 1), (1, 1)),
                                  dimension_numbers=dn, precision=hi) + params["b1"]
    y2 = lax.conv_general_dilated(y1, params["w2"], (2, 2), ((1, 1), (1, 1)),
                                  dimension_numbers=dn, precision=hi) + params["b2"]
    pooled = y2.mean(axis=(1, 2))                    # AdaptiveAvgPool2d(1)
    z = jnp.dot(pooled, params["w3"], precision=hi) + params["b3"]
    return jax.nn.sigmoid(z)


if __name__ == "__main__":
    key = jax.random.PRNGKey(0)
    kx, kp = jax.random.split(key)

    B, C, H, W = 2, 3, 16, 16                        # NCHW, like the PyTorch module
    x = jax.random.normal(kx, (B, C, H, W), jnp.float32)
    params = init_params(kp, in_channels=C, scale_factor=2)

    folded = fold_params(params, (C, H, W))          # one-time exact affine fold

    fwd = jax.jit(clsnet_forward)
    out = jax.block_until_ready(fwd(x, folded))

    ref = jax.block_until_ready(clsnet_reference(x, params))
    assert out.shape == (B, 1), out.shape
    # The fold reorders fp32 summation (nested convs -> one 768-term dot);
    # sigmoid compresses the residual, so the tolerance stays tight.
    assert jnp.allclose(out, ref, atol=1e-4, rtol=1e-4), (out, ref)

    print("KERNEL_OK")
</pallas_src>

<mosaic_0001>
module attributes {stable_mosaic.version = 11 : i64} {
  func.func @_clsnet_kernel(%arg0: memref<2x768xf32, #tpu.memory_space<vmem>>, %arg1: memref<1x768xf32, #tpu.memory_space<vmem>>, %arg2: memref<1xf32, #tpu.memory_space<smem>>, %arg3: memref<2x1xf32, #tpu.memory_space<vmem>>) attributes {dimension_semantics = [], scalar_prefetch = 0 : i64, scratch_operands = 0 : i64, tpu.core_type = #tpu.core_type<tc>} {
    %c0 = arith.constant 0 : index
    %c0_0 = arith.constant 0 : index
    %0 = vector.load %arg0[%c0, %c0_0] : memref<2x768xf32, #tpu.memory_space<vmem>>, vector<2x768xf32>
    %c0_1 = arith.constant 0 : index
    %c0_2 = arith.constant 0 : index
    %1 = vector.load %arg1[%c0_1, %c0_2] : memref<1x768xf32, #tpu.memory_space<vmem>>, vector<1x768xf32>
    %2 = vector.broadcast %1 : vector<1x768xf32> to vector<2x768xf32>
    %3 = arith.mulf %0, %2 : vector<2x768xf32>
    %cst = arith.constant dense<0.000000e+00> : vector<2xf32>
    %4 = vector.multi_reduction <add>, %3, %cst [1] : vector<2x768xf32> to vector<2xf32>
    %5 = vector.shape_cast %4 : vector<2xf32> to vector<2x1xf32>
    %c0_3 = arith.constant 0 : index
    %6 = memref.load %arg2[%c0_3] : memref<1xf32, #tpu.memory_space<smem>>
    %7 = vector.broadcast %6 : f32 to vector<2x1xf32>
    %8 = arith.addf %5, %7 : vector<2x1xf32>
    %9 = arith.negf %8 : vector<2x1xf32>
    %10 = math.exp %9 : vector<2x1xf32>
    %cst_4 = arith.constant 1.000000e+00 : f32
    %11 = vector.broadcast %cst_4 : f32 to vector<2x1xf32>
    %12 = arith.addf %11, %10 : vector<2x1xf32>
    %13 = arith.divf %11, %12 : vector<2x1xf32>
    %c0_5 = arith.constant 0 : index
    %c0_6 = arith.constant 0 : index
    %14 = vector.load %arg3[%c0_5, %c0_6] : memref<2x1xf32, #tpu.memory_space<vmem>>, vector<2x1xf32>
    tpu.vector_store %arg3[%c0_5, %c0_6], %13 {strides = array<i32>} : memref<2x1xf32, #tpu.memory_space<vmem>>, vector<2x1xf32>,
    return
  }
}

</mosaic_0001>

<llo_original>
// kernel: clsnet_forward.1
$region0: #{clsnet_forward.1}
  #allocation0 [shape = 'u32[]', space=smem, size = 0x4, offset = 0x4, fixed_abs, tag = 'smem constant byte address 0x4 - core index']
  #allocation1 [shape = 'u32[72,128]{1,0:T(1,128)}', space=vmem, size = 0x9000, scoped, tag = 'internal scratch']
  #allocation2 [shape = 'f32[1]{0:T(128)S(6)}', space=smem, size = 0x200, scoped, tag = 'scoped memory for clsnet_forward.1']
  %s0 = inlined_call_operand.vmem [shape: f32[2,768], index: 0, kind: input, shape index: {}]
  %s1 = inlined_call_operand.vmem [shape: f32[1,768], index: 1, kind: input, shape index: {}]
  %s2 = inlined_call_operand.<no memory space> [shape: f32[1], index: 2, kind: input, shape index: {}]
  %s3 = inlined_call_operand.vmem [shape: f32[2,1], index: 3, kind: output, shape index: {}]
  %s4 = sld [smem:[#allocation0]]
  $region22: #{clsnet_forward.1} parent=0
    _
  %s6 = ssub.s32 1, %s4
  %s7 = scalar_select 0, %s6, %s4
  %8 = sst [smem:[#allocation2]] %s2
  // Predicated region
  $region2: #{clsnet_forward.1} parent=0 // pred_check
    _
  $region3: #{clsnet_forward.1} parent=0 // pred_check_branch
    %10 = sbr.rel (0) target = $region5
  $region4: #{clsnet_forward.1} parent=0 // pred_region
    _
  $region5: #{clsnet_forward.1} parent=0 // pred_fallthru
    _
  // Predicated region
  $region6: #{clsnet_forward.1} parent=0 // pred_check
    _
  $region7: #{clsnet_forward.1} parent=0 // pred_check_branch
    %12 = sbr.rel (0) target = $region9
  $region8: #{clsnet_forward.1} parent=0 // pred_region
    _
  $region9: #{clsnet_forward.1} parent=0 // pred_fallthru
    _
  // Predicated region
  $region10: #{clsnet_forward.1} parent=0 // pred_check
    _
  $region11: #{clsnet_forward.1} parent=0 // pred_check_branch
    %14 = sbr.rel (0) target = $region13
  $region12: #{clsnet_forward.1} parent=0 // pred_region
    _
  $region13: #{clsnet_forward.1} parent=0 // pred_fallthru
    _
  %v15 = vld [vmem:[%s0] sm:$0xff]
  %v16 = vld [vmem:[%s0 + $0x8] sm:$0xf]
  %v17 = vld [vmem:[%s1] sm:$0x3f]
  %v19 = vperm.slane %v17, 0
  %v20 = vperm.slane %v17, 1
  %v21 = vperm.slane %v17, 2
  %v22 = vperm.slane %v17, 3
  %v23 = vperm.slane %v17, 4
  %v24 = vperm.slane %v17, 5
  %v25 = vrot.slane %v20, 6
  %v26 = vrot.slane %v21, 4
  %v27 = vrot.slane %v22, 2
  %v28 = vrot.slane %v24, 6
  %vm29 = vcmask 1041408
  %v30 = vsel %vm29, %v19, %v25
  %vm31 = vcmask 1045508
  %v32 = vsel %vm31, %v26, %v27
  %vm33 = vcmask 1043456
  %v34 = vsel %vm33, %v30, %v32
  %v35 = vsel %vm29, %v23, %v28
  %v38 = vmul.f32 %v15, %v34
  %v39 = vmul.f32 %v16, %v35
  %42 = vst [vmem:[#allocation1] ss:$4 sm:$0xff] %v38
  %s43 = scalar_lea.vmem [#allocation1], 32
  %44 = vst [vmem:[%s43] ss:$4 sm:$0xff] %v39
  %v45 = vld.sshfl [vmem:[#allocation1] sm:$0xff pattern:$0x73625140]
  %v46 = vld.sshfl [vmem:[#allocation1 + $0x8] sm:$0xff pattern:$0x73625140]
  %v47 = vld.sshfl [vmem:[#allocation1 + $0x10] sm:$0xff pattern:$0x73625140]
  %v48 = vld.sshfl [vmem:[#allocation1 + $0x18] sm:$0xff pattern:$0x73625140]
  %v49 = vld.sshfl [vmem:[#allocation1 + $0x20] sm:$0xff pattern:$0x73625140]
  %v50 = vld.sshfl [vmem:[#allocation1 + $0x28] sm:$0xff pattern:$0x73625140]
  %v57 = vsel %vm29, %v45, 0.0
  %v58 = vsel %vm29, %v46, 0.0
  %v59 = vadd.f32 %v57, %v58
  %v60 = vsel %vm29, %v47, 0.0
  %v61 = vadd.f32 %v59, %v60
  %v62 = vsel %vm29, %v48, 0.0
  %v63 = vadd.f32 %v61, %v62
  %v64 = vsel %vm29, %v49, 0.0
  %v65 = vadd.f32 %v63, %v64
  %v66 = vsel %vm29, %v50, 0.0
  %v67 = vadd.f32 %v65, %v66
  %68 = vadd.xlane.f32.xlu0 %v67
  %v69 = vpop.xlane.xlu0 %68
  %s70 = sld [smem:[#allocation2]]
  %v71 = vstv %s70
  %v72 = vadd.f32 %v69, %v71
  %v73 = vxor.u32 %v72, 2147483648
  %v74 = vmul.f32 %v73, 1.442695
  %v75 = vpow.pop %v74
  %v76 = vadd.f32 %v75, 1.0
  %v77 = vrcp.pop %v76
  %v78 = vmul.f32 %v76, %v77
  %v79 = vsub.f32 1.0, %v78
  %v80 = vmul.f32 %v77, %v79
  %v81 = vadd.f32 %v77, %v80
  %vm82 = vweird.f32 %v76
  %vm83 = vweird.f32 %v77
  %vm84 = vmor %vm82, %vm83
  %v85 = vsel %vm84, %v77, %v81
  %v86 = vand.u32 2147483647, %v76
  %vm87 = vcmp.eq.f32.partialorder %v86, 8.507059e+37
  %v88 = vand.u32 %v76, 2147483648
  %v89 = vor.u32 1.1754944e-38, %v88
  %v90 = vsel %vm87, %v89, %v85
  %v91 = vmul.f32 1.0, %v90
  %vm92 = vcmask 1024
  %93 = vst.msk [vmem:[%s3] sm:$0x3] %vm92, %v91
  // Predicated region
  $region14: #{clsnet_forward.1} parent=0 // pred_check
    _
  $region15: #{clsnet_forward.1} parent=0 // pred_check_branch
    %95 = sbr.rel (0) target = $region17
  $region16: #{clsnet_forward.1} parent=0 // pred_region
    _
  $region17: #{clsnet_forward.1} parent=0 // pred_fallthru
    _
  // Predicated region
  $region18: #{clsnet_forward.1} parent=0 // pred_check
    _
  $region19: #{clsnet_forward.1} parent=0 // pred_check_branch
    %97 = sbr.rel (0) target = $region21
  $region20: #{clsnet_forward.1} parent=0 // pred_region
    _
  $region21: #{clsnet_forward.1} parent=0 // pred_fallthru
    _

</llo_original>
